<compile_context>
chip_gen: v7x
topology: tpu7x:2x2x1
jax: 0.10.0
libtpu: 0.0.40
codegen_flags: <defaults>
</compile_context>

<pallas_src>
import jax
import jax.numpy as jnp
from jax import lax
from jax.experimental import pallas as pl
from jax.experimental.pallas import tpu as pltpu

INPUT_DIM = 32
HIDDEN_DIM = 16
OUTPUT_DIM = 1

MAX_TM = 32768                      # batch tile; ~4 MiB streamed f32 x per step
_VMEM_LIMIT = 48 * 1024 * 1024      # explicit scoped-VMEM budget (safe on v5e/v6e/v7x)


def _round_up(x, m):
    return ((x + m - 1) // m) * m


def _pick_tiling(batch, max_tm=MAX_TM):
    """Choose (tile, grid_len) without padding the batch in HBM.

    - small batch: single full-array block (full-dim blocks are always legal);
    - large batch: >= 2 grid steps (so v7x's two TensorCores both get work),
      128-aligned tiles, ragged final block handled by Pallas.
    """
    if batch <= 256:
        return batch, 1
    n_tiles = max(2, pl.cdiv(batch, max_tm))
    tile = _round_up(pl.cdiv(batch, n_tiles), 128)
    return tile, pl.cdiv(batch, tile)


def cardnn_kernel(x_ref, w1t_ref, b1_ref, w2_ref, b2_ref, out_ref):
    # fc1 on the MXU with the batch on lanes:
    #   [hidden, in] . [tm, in]^T -> [hidden, tm]   (A @ B^T, contract input_dim)
    # x arrives in its natural [tm, input_dim] layout; no wrapper transpose pass.
    h = lax.dot_general(
        w1t_ref[...], x_ref[...],
        dimension_numbers=(((1,), (1,)), ((), ())),
        preferred_element_type=jnp.float32,
    )
    # Bias + ReLU on the f32 accumulator (VPU).
    h = jnp.maximum(h + b1_ref[...], 0.0)
    # fc2 (K=16, N=1): VPU multiply + sublane reduce keeps the result a
    # lane-dense [1, tm] slab instead of a degenerate N=1 MXU pass.
    y = jnp.sum(h * w2_ref[...], axis=0, keepdims=True) + b2_ref[...]
    out_ref[...] = y.astype(out_ref.dtype)


def cardnn_forward(x, w1, b1, w2, b2, *, max_tm=MAX_TM):
    """x: [B, input_dim] f32; w1: [input_dim, hidden]; b1: [hidden];
    w2: [hidden, output_dim(=1)]; b2: [output_dim].  Returns [B, output_dim] f32."""
    B = x.shape[0]
    tm, grid_len = _pick_tiling(B, max_tm)

    # Only tiny weight reshapes happen in the wrapper; x is fed as-is.
    x = jnp.asarray(x, jnp.float32)
    w1t = jnp.asarray(w1, jnp.float32).T                            # [hidden, in]
    b1_col = jnp.asarray(b1, jnp.float32).reshape(HIDDEN_DIM, 1)    # [hidden, 1]
    w2_col = jnp.asarray(w2, jnp.float32).reshape(HIDDEN_DIM, 1)    # [hidden, 1]
    b2_col = jnp.asarray(b2, jnp.float32).reshape(1, 1)             # [1, 1]

    flops = B * (2 * INPUT_DIM * HIDDEN_DIM + 2 * HIDDEN_DIM * OUTPUT_DIM)
    bytes_accessed = (
        x.size * 4
        + (w1t.size + b1_col.size + w2_col.size + b2_col.size) * 4
        + B * OUTPUT_DIM * 4
    )

    out = pl.pallas_call(
        cardnn_kernel,
        out_shape=jax.ShapeDtypeStruct((1, B), jnp.float32),
        grid=(grid_len,),
        in_specs=[
            pl.BlockSpec((tm, INPUT_DIM), lambda i: (i, 0)),          # x tile (natural layout)
            pl.BlockSpec((HIDDEN_DIM, INPUT_DIM), lambda i: (0, 0)),  # w1^T (resident)
            pl.BlockSpec((HIDDEN_DIM, 1), lambda i: (0, 0)),          # b1
            pl.BlockSpec((HIDDEN_DIM, 1), lambda i: (0, 0)),          # w2
            pl.BlockSpec((1, 1), lambda i: (0, 0)),                   # b2
        ],
        out_specs=pl.BlockSpec((1, tm), lambda i: (0, i)),            # lane-dense output
        compiler_params=pltpu.CompilerParams(
            # Shard batch tiles across TensorCores (v7x has 2).
            # TODO(synk): if a profile shows one TC idle, switch to pltpu.CORE_PARALLEL.
            dimension_semantics=("parallel",),
            vmem_limit_bytes=_VMEM_LIMIT,
        ),
        cost_estimate=pl.CostEstimate(
            flops=flops, transcendentals=0, bytes_accessed=bytes_accessed),
    )(x, w1t, b1_col, w2_col, b2_col)

    return out[0, :B].reshape(B, OUTPUT_DIM)


def init_params(key):
    # Deterministic init mimicking nn.Linear's uniform(-1/sqrt(fan_in), 1/sqrt(fan_in)).
    k1, k2, k3, k4 = jax.random.split(key, 4)
    bound1 = 1.0 / jnp.sqrt(float(INPUT_DIM))
    bound2 = 1.0 / jnp.sqrt(float(HIDDEN_DIM))
    w1 = jax.random.uniform(k1, (INPUT_DIM, HIDDEN_DIM), jnp.float32, -bound1, bound1)
    b1 = jax.random.uniform(k2, (HIDDEN_DIM,), jnp.float32, -bound1, bound1)
    w2 = jax.random.uniform(k3, (HIDDEN_DIM, OUTPUT_DIM), jnp.float32, -bound2, bound2)
    b2 = jax.random.uniform(k4, (OUTPUT_DIM,), jnp.float32, -bound2, bound2)
    return w1, b1, w2, b2


if __name__ == "__main__":
    key = jax.random.PRNGKey(0)
    kx, kx2, kp = jax.random.split(key, 3)
    w1, b1, w2, b2 = init_params(kp)

    def ref(xv):
        return jnp.maximum(xv @ w1 + b1, 0.0) @ w2 + b2

    # Small batch: single full-array block path.
    B = 8
    x = jax.random.normal(kx, (B, INPUT_DIM), jnp.float32)
    out = jax.block_until_ready(cardnn_forward(x, w1, b1, w2, b2))
    assert out.shape == (B, OUTPUT_DIM)
    assert jnp.allclose(out, ref(x), atol=2e-2, rtol=2e-2)

    # Multi-tile path with a ragged final block (still a small problem).
    B2 = 300
    x2 = jax.random.normal(kx2, (B2, INPUT_DIM), jnp.float32)
    out2 = jax.block_until_ready(cardnn_forward(x2, w1, b1, w2, b2))
    assert out2.shape == (B2, OUTPUT_DIM)
    assert jnp.allclose(out2, ref(x2), atol=2e-2, rtol=2e-2)

    print("KERNEL_OK")
</pallas_src>

<mosaic_0001>
module attributes {stable_mosaic.version = 11 : i64} {
  func.func @cardnn_kernel(%arg0: i32, %arg1: memref<8x32xf32, #tpu.memory_space<vmem>>, %arg2: memref<16x32xf32, #tpu.memory_space<vmem>>, %arg3: memref<16x1xf32, #tpu.memory_space<vmem>>, %arg4: memref<16x1xf32, #tpu.memory_space<vmem>>, %arg5: memref<1x1xf32, #tpu.memory_space<vmem>>, %arg6: memref<1x8xf32, #tpu.memory_space<vmem>>) attributes {dimension_semantics = [#tpu.dimension_semantics<parallel>], iteration_bounds = array<i64: 1>, scalar_prefetch = 0 : i64, scratch_operands = 0 : i64, tpu.core_type = #tpu.core_type<tc>, window_params = [{transform_indices = @transform_0, window_bounds = array<i64: 8, 32>}, {pipeline_mode = #tpu.pipeline_mode<synchronous>, transform_indices = @transform_1, window_bounds = array<i64: 16, 32>}, {pipeline_mode = #tpu.pipeline_mode<synchronous>, transform_indices = @transform_2, window_bounds = array<i64: 16, 1>}, {pipeline_mode = #tpu.pipeline_mode<synchronous>, transform_indices = @transform_3, window_bounds = array<i64: 16, 1>}, {pipeline_mode = #tpu.pipeline_mode<synchronous>, transform_indices = @transform_4, window_bounds = array<i64: 1, 1>}, {transform_indices = @transform_5, window_bounds = array<i64: 1, 8>}]} {
    %c0 = arith.constant 0 : index
    %c0_0 = arith.constant 0 : index
    %0 = vector.load %arg2[%c0, %c0_0] : memref<16x32xf32, #tpu.memory_space<vmem>>, vector<16x32xf32>
    %c0_1 = arith.constant 0 : index
    %c0_2 = arith.constant 0 : index
    %1 = vector.load %arg1[%c0_1, %c0_2] : memref<8x32xf32, #tpu.memory_space<vmem>>, vector<8x32xf32>
    %cst = arith.constant dense<0.000000e+00> : vector<16x8xf32>
    %2 = tpu.matmul %0, %1, %cst {dimension_numbers = #tpu.dot_dimension_numbers<[1], [1], [0], [0], [0, 0, 1, 0], [], []>} : vector<16x32xf32>, vector<8x32xf32>, vector<16x8xf32> -> vector<16x8xf32>
    %c0_3 = arith.constant 0 : index
    %c0_4 = arith.constant 0 : index
    %3 = vector.load %arg3[%c0_3, %c0_4] : memref<16x1xf32, #tpu.memory_space<vmem>>, vector<16x1xf32>
    %4 = vector.broadcast %3 : vector<16x1xf32> to vector<16x8xf32>
    %5 = arith.addf %2, %4 : vector<16x8xf32>
    %cst_5 = arith.constant 0.000000e+00 : f32
    %6 = vector.broadcast %cst_5 : f32 to vector<16x8xf32>
    %7 = arith.maximumf %5, %6 : vector<16x8xf32>
    %c0_6 = arith.constant 0 : index
    %c0_7 = arith.constant 0 : index
    %8 = vector.load %arg4[%c0_6, %c0_7] : memref<16x1xf32, #tpu.memory_space<vmem>>, vector<16x1xf32>
    %9 = vector.broadcast %8 : vector<16x1xf32> to vector<16x8xf32>
    %10 = arith.mulf %7, %9 : vector<16x8xf32>
    %cst_8 = arith.constant dense<0.000000e+00> : vector<8xf32>
    %11 = vector.multi_reduction <add>, %10, %cst_8 [0] : vector<16x8xf32> to vector<8xf32>
    %12 = vector.shape_cast %11 : vector<8xf32> to vector<1x8xf32>
    %c0_9 = arith.constant 0 : index
    %c0_10 = arith.constant 0 : index
    %13 = vector.load %arg5[%c0_9, %c0_10] : memref<1x1xf32, #tpu.memory_space<vmem>>, vector<1x1xf32>
    %14 = vector.broadcast %13 : vector<1x1xf32> to vector<1x8xf32>
    %15 = arith.addf %12, %14 : vector<1x8xf32>
    %c0_11 = arith.constant 0 : index
    %c0_12 = arith.constant 0 : index
    %16 = vector.load %arg6[%c0_11, %c0_12] : memref<1x8xf32, #tpu.memory_space<vmem>>, vector<1x8xf32>
    tpu.vector_store %arg6[%c0_11, %c0_12], %15 {strides = array<i32>} : memref<1x8xf32, #tpu.memory_space<vmem>>, vector<1x8xf32>,
    return
  }
  func.func @transform_0(%arg0: i32) -> (i32, i32) {
    %c0_i32 = arith.constant 0 : i32
    %c0_i32_0 = arith.constant 0 : i32
    return %arg0, %c0_i32 : i32, i32
  }
  func.func @transform_1(%arg0: i32) -> (i32, i32) {
    %c0_i32 = arith.constant 0 : i32
    %c0_i32_0 = arith.constant 0 : i32
    %c0_i32_1 = arith.constant 0 : i32
    return %c0_i32, %c0_i32_0 : i32, i32
  }
  func.func @transform_2(%arg0: i32) -> (i32, i32) {
    %c0_i32 = arith.constant 0 : i32
    %c0_i32_0 = arith.constant 0 : i32
    %c0_i32_1 = arith.constant 0 : i32
    return %c0_i32, %c0_i32_0 : i32, i32
  }
  func.func @transform_3(%arg0: i32) -> (i32, i32) {
    %c0_i32 = arith.constant 0 : i32
    %c0_i32_0 = arith.constant 0 : i32
    %c0_i32_1 = arith.constant 0 : i32
    return %c0_i32, %c0_i32_0 : i32, i32
  }
  func.func @transform_4(%arg0: i32) -> (i32, i32) {
    %c0_i32 = arith.constant 0 : i32
    %c0_i32_0 = arith.constant 0 : i32
    %c0_i32_1 = arith.constant 0 : i32
    return %c0_i32, %c0_i32_0 : i32, i32
  }
  func.func @transform_5(%arg0: i32) -> (i32, i32) {
    %c0_i32 = arith.constant 0 : i32
    %c0_i32_0 = arith.constant 0 : i32
    return %c0_i32, %arg0 : i32, i32
  }
}

</mosaic_0001>

<llo_original>
// kernel: tpu_custom_call.1
$region0: #{tpu_custom_call.1}
  #allocation0 [shape = 'u32[]', space=smem, size = 0x4, offset = 0x4, fixed_abs, tag = 'smem constant byte address 0x4 - core index']
  #allocation1 [shape = 'u32[144,128]{1,0:T(1,128)}', space=vmem, size = 0x12000, scoped, tag = 'internal scratch']
  #allocation2 [shape = 'f32[1,1]{1,0:T(1,128)S(1)}', space=vmem, size = 0x200, scoped, tag = 'scoped memory for tpu_custom_call.1']
  %s0 = inlined_call_operand.vmem [shape: f32[8,32], index: 0, kind: input, shape index: {}]
  %s1 = inlined_call_operand.vmem [shape: f32[16,32], index: 1, kind: input, shape index: {}]
  %s2 = inlined_call_operand.vmem [shape: f32[16,1], index: 2, kind: input, shape index: {}]
  %s3 = inlined_call_operand.vmem [shape: f32[16,1], index: 3, kind: input, shape index: {}]
  %s4 = inlined_call_operand.<no memory space> [shape: f32[1,1], index: 4, kind: input, shape index: {}]
  %s5 = inlined_call_operand.hbm [shape: f32[1,8], index: 5, kind: output, shape index: {}]
  %s6 = sld [smem:[#allocation0]]
  $region30: #{tpu_custom_call.1} parent=0
    _
  %s8 = ssub.s32 1, %s6
  %s9 = scalar_select 0, %s8, %s6
  %v10 = vstv %s4
  %11 = vst [vmem:[#allocation2] sm:$0x1] %v10
  $region1: #{tpu_custom_call.1} parent=0
    #allocation3 [shape = 'u8[512]{0}', space=vmem, size = 0x400, scoped, tag = 'output window, operand 0, single buffered']
    #allocation4 [shape = 's32[1]{0}', space=sflag, size = 0x4, scoped, tag = 'scoped memory for tpu_custom_call.1']
    %12 = vsyncpa [#allocation4], 0
    // Predicated region
    $region2: #{tpu_custom_call.1} parent=1 // pred_check
      _
    $region3: #{tpu_custom_call.1} parent=1 // pred_check_branch
      %14 = sbr.rel (0) target = $region5
    $region4: #{tpu_custom_call.1} parent=1 // pred_region
      _
    $region5: #{tpu_custom_call.1} parent=1 // pred_fallthru
      _
    // Predicated region
    $region6: #{tpu_custom_call.1} parent=1 // pred_check
      _
    $region7: #{tpu_custom_call.1} parent=1 // pred_check_branch
      %16 = sbr.rel (0) target = $region9
    $region8: #{tpu_custom_call.1} parent=1 // pred_region
      _
    $region9: #{tpu_custom_call.1} parent=1 // pred_fallthru
      _
    // Predicated region
    $region10: #{tpu_custom_call.1} parent=1 // pred_check
      _
    $region11: #{tpu_custom_call.1} parent=1 // pred_check_branch
      %18 = sbr.rel (0) target = $region13
    $region12: #{tpu_custom_call.1} parent=1 // pred_region
      _
    $region13: #{tpu_custom_call.1} parent=1 // pred_fallthru
      _
    // Predicated region
    $region14: #{tpu_custom_call.1} parent=1 // pred_check
      _
    $region15: #{tpu_custom_call.1} parent=1 // pred_check_branch
      %20 = sbr.rel (0) target = $region17
    $region16: #{tpu_custom_call.1} parent=1 // pred_region
      _
    $region17: #{tpu_custom_call.1} parent=1 // pred_fallthru
      _
    // Predicated region
    $region18: #{tpu_custom_call.1} parent=1 // pred_check
      _
    $region19: #{tpu_custom_call.1} parent=1 // pred_check_branch
      %22 = sbr.rel (0) target = $region21
    $region20: #{tpu_custom_call.1} parent=1 // pred_region
      _
    $region21: #{tpu_custom_call.1} parent=1 // pred_fallthru
      _
    %v23 = vld [vmem:[%s1] sm:$0xff]
    %v24 = vld [vmem:[%s1 + $0x8] sm:$0xff]
    %v25 = vld [vmem:[%s0] sm:$0xff]
    %v26 = vld [vmem:[%s2] sm:$0xff]
    %v27 = vld [vmem:[%s2 + $0x8] sm:$0xff]
    %29 = vset.pattern.permute.xlu0 0
    %30 = vperm.xlu0 %29, %v26
    %v31 = vpop.permute.xlu0 %30
    %34 = vset.pattern.permute.xlu0 0
    %35 = vperm.xlu0 %34, %v27
    %v36 = vpop.permute.xlu0 %35
    %vm38 = vcmask 261120
    %v40 = vsel %vm38, %v23, 0
    %v43 = vsel %vm38, %v24, 0
    %v46 = vsel %vm38, %v25, 0
    %48 = vmatprep.subr.mxu0 0.0
    %49 = vmatpush1.xpose.msra.mxu0 %v46
    %50 = vmatprep.subr.mxu0 0.0
    %51 = vmatpush1.xpose.msra.mxu0 0.0
    %52 = vmatprep.subr.mxu0 0.0
    %53 = vmatpush1.xpose.msra.mxu0 0.0
    %54 = vmatprep.subr.mxu0 0.0
    %55 = vmatpush1.xpose.msra.mxu0 0.0
    %56 = vmatprep.subr.mxu0 0.0
    %57 = vmatpush1.xpose.msra.mxu0 0.0
    %58 = vmatprep.subr.mxu0 0.0
    %59 = vmatpush1.xpose.msra.mxu0 0.0
    %60 = vmatprep.subr.mxu0 0.0
    %61 = vmatpush1.xpose.msra.mxu0 0.0
    %62 = vmatprep.subr.mxu0 0.0
    %63 = vmatpush1.xpose.msra.mxu0 0.0
    %64 = vmatprep.subr.mxu0 0.0
    %65 = vmatpush1.xpose.msra.mxu0 0.0
    %66 = vmatprep.subr.mxu0 0.0
    %67 = vmatpush1.xpose.msra.mxu0 0.0
    %68 = vmatprep.subr.mxu0 0.0
    %69 = vmatpush1.xpose.msra.mxu0 0.0
    %70 = vmatprep.subr.mxu0 0.0
    %71 = vmatpush1.xpose.msra.mxu0 0.0
    %72 = vmatprep.subr.mxu0 0.0
    %73 = vmatpush1.xpose.msra.mxu0 0.0
    %74 = vmatprep.subr.mxu0 0.0
    %75 = vmatpush1.xpose.msra.mxu0 0.0
    %76 = vmatprep.subr.mxu0 0.0
    %77 = vmatpush1.xpose.msra.mxu0 0.0
    %78 = vmatprep.subr.mxu0 0.0
    %79 = vmatpush1.xpose.msra.mxu0 0.0
    %80 = vmatprep.subr.mxu0 0.0
    %81 = vmatpush1.xpose.msra.mxu0 0.0
    %82 = vmatprep.subr.mxu0 0.0
    %83 = vmatpush1.xpose.msra.mxu0 0.0
    %84 = vmatprep.subr.mxu0 0.0
    %85 = vmatpush1.xpose.msra.mxu0 0.0
    %86 = vmatprep.subr.mxu0 0.0
    %87 = vmatpush1.xpose.msra.mxu0 0.0
    %88 = vmatprep.subr.mxu0 0.0
    %89 = vmatpush1.xpose.msra.mxu0 0.0
    %90 = vmatprep.subr.mxu0 0.0
    %91 = vmatpush1.xpose.msra.mxu0 0.0
    %92 = vmatprep.subr.mxu0 0.0
    %93 = vmatpush1.xpose.msra.mxu0 0.0
    %94 = vmatprep.subr.mxu0 0.0
    %95 = vmatpush1.xpose.msra.mxu0 0.0
    %96 = vmatprep.subr.mxu0 0.0
    %97 = vmatpush1.xpose.msra.mxu0 0.0
    %98 = vmatprep.subr.mxu0 0.0
    %99 = vmatpush1.xpose.msra.mxu0 0.0
    %100 = vmatprep.subr.mxu0 0.0
    %101 = vmatpush1.xpose.msra.mxu0 0.0
    %102 = vmatprep.subr.mxu0 0.0
    %103 = vmatpush1.xpose.msra.mxu0 0.0
    %104 = vmatprep.subr.mxu0 0.0
    %105 = vmatpush1.xpose.msra.mxu0 0.0
    %106 = vmatprep.subr.mxu0 0.0
    %107 = vmatpush1.xpose.msra.mxu0 0.0
    %108 = vmatprep.subr.mxu0 0.0
    %109 = vmatpush1.xpose.msra.mxu0 0.0
    %110 = vmatprep.subr.mxu0 0.0
    %111 = vmatpush1.xpose.msra.mxu0 0.0
    %112 = vmatprep.mubr.f32.mxu0 0.0
    %113 = vmatmul.mubr.f32.gmra.mrb[0].mxu0 %v40
    %v114 = vpop.f32.mrb[0].mxu0
    %v115 = vadd.f32 %v31, %v114
    %v116 = vpop.f32.mrb[0].mxu0
    %117 = vmatprep.mubr.f32.mxu0 0.0
    %118 = vmatmul.mubr.f32.gmra.mrb[0].mxu0 %v43
    %v119 = vpop.f32.mrb[0].mxu0
    %v120 = vadd.f32 %v36, %v119
    %v121 = vpop.f32.mrb[0].mxu0
    %122 = vdwg.mxu0
    %v123 = vmax.f32 %v115, 0.0
    %v124 = vmax.f32 %v120, 0.0
    %v125 = vld [vmem:[%s3] sm:$0xff]
    %v126 = vld [vmem:[%s3 + $0x8] sm:$0xff]
    %128 = vset.pattern.permute.xlu0 0
    %129 = vperm.xlu0 %128, %v125
    %v130 = vpop.permute.xlu0 %129
    %133 = vset.pattern.permute.xlu0 0
    %134 = vperm.xlu0 %133, %v126
    %v135 = vpop.permute.xlu0 %134
    %v137 = vmul.f32 %v123, %v130
    %v138 = vmul.f32 %v124, %v135
    %vm139 = vcmask 64512
    %v140 = vsel %vm139, %v137, 0.0
    %v141 = vsel %vm139, %v138, 0.0
    %v142 = vadd.f32 %v140, %v141
    %v143 = vrot.slane %v142, 4
    %v144 = vadd.f32 %v142, %v143
    %v145 = vrot.slane %v144, 2
    %v146 = vadd.f32 %v144, %v145
    %v147 = vrot.slane %v146, 1
    %v148 = vadd.f32 %v146, %v147
    %v149 = vld [vmem:[#allocation2] sm:$0x1]
    %151 = vset.pattern.permute.xlu0 0
    %152 = vperm.xlu0 %151, %v149
    %v153 = vpop.permute.xlu0 %152
    %v155 = vlaneseq
    %v156 = vshrl.u32 %v155, 7
    %v157 = vsub.s32 0, %v156
    %v158 = vrot.slane %v153, %v157
    %v159 = vadd.f32 %v148, %v158
    %vm160 = vcmask 57344
    %161 = vst.msk [vmem:[#allocation3] sm:$0x1] %vm160, %v159
    // Predicated region
    $region22: #{tpu_custom_call.1} parent=1 // pred_check
      _
    $region23: #{tpu_custom_call.1} parent=1 // pred_check_branch
      %163 = sbr.rel (0) target = $region25
    $region24: #{tpu_custom_call.1} parent=1 // pred_region
      %s165 = ssub.s32 16, 16
      %166 = vsyncadd [#allocation4], %s165
      %s168 = sshll.u32 [#allocation3], 4
      %s169 = int_to_ptr.vmem [resolvable:$true] %s168
      %171 = dma.vmem_to_hbm [thread:$0]  %s169, 16, %s5, [#allocation4]
    $region25: #{tpu_custom_call.1} parent=1 // pred_fallthru
      _
    // Predicated region
    $region26: #{tpu_custom_call.1} parent=1 // pred_check
      _
    $region27: #{tpu_custom_call.1} parent=1 // pred_check_branch
      %173 = sbr.rel (0) target = $region29
    $region28: #{tpu_custom_call.1} parent=1 // pred_region
      %174 = dma.done [#allocation4], 16
    $region29: #{tpu_custom_call.1} parent=1 // pred_fallthru
      _
    %175 = vsyncpa [#allocation4], 1

</llo_original>
